<compile_context>
chip_gen: v5e
topology: v5e:2x2
jax: 0.10.0
libtpu: 0.0.40
codegen_flags: <defaults>
</compile_context>

<pallas_src>
import numpy as np
import jax
import jax.numpy as jnp
from jax.experimental import pallas as pl
from jax.experimental.pallas import tpu as pltpu


# ---------------------------------------------------------------------------
# Helpers
# ---------------------------------------------------------------------------

def _round_up(x, m):
    return ((x + m - 1) // m) * m


def _choose_tk(K):
    """K-reduction tile: full K when it is small, otherwise a 128-multiple divisor."""
    if K <= 1024:
        return K
    for cand in (768, 640, 512, 384, 256, 128):
        if K % cand == 0:
            return cand
    return K


# ---------------------------------------------------------------------------
# Pallas kernels
# ---------------------------------------------------------------------------

def _make_conv_mm_kernel(relu: bool, has_res: bool):
    """Tiled im2col-matmul with f32 accumulator; epilogue: +bias [+residual] [ReLU]."""
    def kernel(*refs):
        if has_res:
            p_ref, w_ref, b_ref, r_ref, o_ref, acc_ref = refs
        else:
            p_ref, w_ref, b_ref, o_ref, acc_ref = refs
        k = pl.program_id(2)

        @pl.when(k == 0)
        def _():
            acc_ref[...] = jnp.zeros_like(acc_ref)

        acc_ref[...] += jnp.dot(p_ref[...], w_ref[...],
                                preferred_element_type=jnp.float32)

        @pl.when(k == pl.num_programs(2) - 1)
        def _():
            out = acc_ref[...] + b_ref[...]
            if has_res:
                out = out + r_ref[...].astype(jnp.float32)
            if relu:
                out = jnp.maximum(out, 0.0)
            o_ref[...] = out.astype(o_ref.dtype)

    return kernel


def _maxpool_kernel(t_ref, o_ref):
    # t_ref: (9, tm, C) window taps for a tile of output rows; max over the tap axis.
    o_ref[...] = jnp.max(t_ref[...], axis=0)


# ---------------------------------------------------------------------------
# Conv + BN (+ residual) (+ ReLU) wrapper
# ---------------------------------------------------------------------------

def conv_bn_act(x, w, scale, bias, *, stride=1, dilation=1, padding=0,
                relu=True, residual=None):
    """x: NHWC (bf16).  w: PyTorch layout (Cout, Cin, KH, KW).  Returns NHWC bf16."""
    x = x.astype(jnp.bfloat16)
    N, H, W, Cin = x.shape
    Cout, Cin2, KH, KW = w.shape
    assert Cin == Cin2

    xp = jnp.pad(x, ((0, 0), (padding, padding), (padding, padding), (0, 0)))
    Hp, Wp = xp.shape[1], xp.shape[2]
    Ho = (Hp - dilation * (KH - 1) - 1) // stride + 1
    Wo = (Wp - dilation * (KW - 1) - 1) // stride + 1

    # im2col (data movement only; compute happens in the Pallas kernel)
    # TODO(synk): 3x3 convs still materialize the KHxKW im2col copy in HBM (in bf16);
    # the K grid axis keeps only one (tm, tk) slab live in VMEM at a time.
    taps = []
    for i in range(KH):
        for j in range(KW):
            taps.append(jax.lax.slice(
                xp,
                (0, i * dilation, j * dilation, 0),
                (N, i * dilation + (Ho - 1) * stride + 1,
                 j * dilation + (Wo - 1) * stride + 1, Cin),
                (1, stride, stride, 1)))
    if len(taps) == 1:
        pmat = taps[0].reshape(N * Ho * Wo, Cin)
    else:
        pmat = jnp.concatenate(taps, axis=-1).reshape(N * Ho * Wo, KH * KW * Cin)

    M, K = pmat.shape

    # Fold the BN scale into the bf16 weight matrix; keep bias in f32 for the epilogue.
    wmat = jnp.transpose(w, (2, 3, 1, 0)).reshape(K, Cout).astype(jnp.float32)
    wmat = (wmat * scale.astype(jnp.float32)[None, :]).astype(jnp.bfloat16)
    bvec = bias.astype(jnp.float32).reshape(1, Cout)

    # Lane-dense output tiles: pad Cout to a multiple of 128 (stem convs have Cout=64).
    Cp = _round_up(Cout, 128)
    if Cp != Cout:
        wmat = jnp.pad(wmat, ((0, 0), (0, Cp - Cout)))
        bvec = jnp.pad(bvec, ((0, 0), (0, Cp - Cout)))

    tn = 128
    tk = _choose_tk(K)
    tm = M if M <= 512 else 512
    grid = (pl.cdiv(M, tm), Cp // tn, K // tk)

    has_res = residual is not None
    in_specs = [
        pl.BlockSpec((tm, tk), lambda i, j, k: (i, k)),
        pl.BlockSpec((tk, tn), lambda i, j, k: (k, j)),
        pl.BlockSpec((1, tn), lambda i, j, k: (0, j)),
    ]
    args = [pmat, wmat, bvec]
    if has_res:
        rmat = residual.astype(jnp.bfloat16).reshape(M, Cout)
        if Cp != Cout:
            rmat = jnp.pad(rmat, ((0, 0), (0, Cp - Cout)))
        in_specs.append(pl.BlockSpec((tm, tn), lambda i, j, k: (i, j)))
        args.append(rmat)

    out = pl.pallas_call(
        _make_conv_mm_kernel(relu, has_res),
        out_shape=jax.ShapeDtypeStruct((M, Cp), jnp.bfloat16),
        grid=grid,
        in_specs=in_specs,
        out_specs=pl.BlockSpec((tm, tn), lambda i, j, k: (i, j)),
        scratch_shapes=[pltpu.VMEM((tm, tn), jnp.float32)],
        compiler_params=pltpu.CompilerParams(
            dimension_semantics=("parallel", "parallel", "arbitrary"),
            vmem_limit_bytes=32 * 1024 * 1024),
    )(*args)

    if Cp != Cout:
        out = out[:, :Cout]
    return out.reshape(N, Ho, Wo, Cout)


# ---------------------------------------------------------------------------
# MaxPool2d(kernel=3, stride=2, padding=1, ceil_mode=True)
# ---------------------------------------------------------------------------

def maxpool3x3_s2_ceil(x):
    x = x.astype(jnp.bfloat16)
    N, H, W, C = x.shape
    k, s, p = 3, 2, 1

    def out_dim(d):
        o = -(-(d + 2 * p - k) // s) + 1          # ceil mode
        if (o - 1) * s >= d + p:                  # PyTorch adjustment
            o -= 1
        return o

    Ho, Wo = out_dim(H), out_dim(W)
    pad_h_r = (Ho - 1) * s + k - (H + p)
    pad_w_r = (Wo - 1) * s + k - (W + p)
    xp = jnp.pad(x, ((0, 0), (p, max(pad_h_r, 0)), (p, max(pad_w_r, 0)), (0, 0)),
                 constant_values=-np.inf)

    taps = []
    for i in range(k):
        for j in range(k):
            taps.append(jax.lax.slice(
                xp, (0, i, j, 0),
                (N, i + (Ho - 1) * s + 1, j + (Wo - 1) * s + 1, C),
                (1, s, s, 1)))
    M = N * Ho * Wo
    t = jnp.stack(taps, axis=0).reshape(k * k, M, C)

    tm = M if M <= 512 else 512
    out = pl.pallas_call(
        _maxpool_kernel,
        out_shape=jax.ShapeDtypeStruct((M, C), jnp.bfloat16),
        grid=(pl.cdiv(M, tm),),
        in_specs=[pl.BlockSpec((k * k, tm, C), lambda i: (0, i, 0))],
        out_specs=pl.BlockSpec((tm, C), lambda i: (i, 0)),
        compiler_params=pltpu.CompilerParams(
            dimension_semantics=("parallel",)),
    )(t)
    return out.reshape(N, Ho, Wo, C)


# ---------------------------------------------------------------------------
# Parameters (deterministic synthetic init)
# ---------------------------------------------------------------------------

class KeyGen:
    def __init__(self, key):
        self._key = key

    def __call__(self):
        self._key, k = jax.random.split(self._key)
        return k


def init_conv(key, cout, cin, kh, kw):
    fan_in = cin * kh * kw
    return (jax.random.normal(key, (cout, cin, kh, kw), jnp.float32)
            * (1.0 / np.sqrt(fan_in)))


def init_bn_folded(key, c, eps=1e-5):
    k1, k2, k3, k4 = jax.random.split(key, 4)
    gamma = 1.0 + 0.1 * jax.random.normal(k1, (c,), jnp.float32)
    beta = 0.1 * jax.random.normal(k2, (c,), jnp.float32)
    mean = 0.1 * jax.random.normal(k3, (c,), jnp.float32)
    var = 0.5 + jax.random.uniform(k4, (c,), jnp.float32)
    scale = gamma / jnp.sqrt(var + eps)
    bias = beta - mean * scale
    return scale, bias


def init_bottleneck(kg, inplanes, planes, has_ds):
    p = {}
    p['w1'] = init_conv(kg(), planes, inplanes, 1, 1)
    p['s1'], p['b1'] = init_bn_folded(kg(), planes)
    p['w2'] = init_conv(kg(), planes, planes, 3, 3)
    p['s2'], p['b2'] = init_bn_folded(kg(), planes)
    p['w3'] = init_conv(kg(), planes * 4, planes, 1, 1)
    p['s3'], p['b3'] = init_bn_folded(kg(), planes * 4)
    if has_ds:
        p['wd'] = init_conv(kg(), planes * 4, inplanes, 1, 1)
        p['sd'], p['bd'] = init_bn_folded(kg(), planes * 4)
    return p


def make_layer(kg, inplanes, planes, blocks, stride=1, dilation=1, multi_grid=1):
    gen_mg = lambda idx, grids: (grids[idx % len(grids)]
                                 if isinstance(grids, tuple) else 1)
    layer = []
    has_ds = (stride != 1) or (inplanes != planes * 4)
    layer.append(dict(params=init_bottleneck(kg, inplanes, planes, has_ds),
                      stride=stride, dilation=dilation,
                      multi_grid=gen_mg(0, multi_grid), has_ds=has_ds))
    inplanes = planes * 4
    for i in range(1, blocks):
        layer.append(dict(params=init_bottleneck(kg, inplanes, planes, False),
                          stride=1, dilation=dilation,
                          multi_grid=gen_mg(i, multi_grid), has_ds=False))
    return layer, inplanes


def build_params(kg, layers=(1, 1, 1, 1)):
    p = {}
    p['conv1'] = init_conv(kg(), 64, 3, 3, 3)
    p['s1'], p['b1'] = init_bn_folded(kg(), 64)
    p['conv2'] = init_conv(kg(), 64, 64, 3, 3)
    p['s2'], p['b2'] = init_bn_folded(kg(), 64)
    p['conv3'] = init_conv(kg(), 128, 64, 3, 3)
    p['s3'], p['b3'] = init_bn_folded(kg(), 128)

    inplanes = 128
    layer1, inplanes = make_layer(kg, inplanes, 64, layers[0])
    layer2, inplanes = make_layer(kg, inplanes, 128, layers[1], stride=2)
    layer3, inplanes = make_layer(kg, inplanes, 256, layers[2], stride=1, dilation=2)
    layer4, inplanes = make_layer(kg, inplanes, 512, layers[3], stride=1,
                                  dilation=4, multi_grid=(1, 1, 1))
    p['layers'] = [layer1, layer2, layer3, layer4]
    return p


# ---------------------------------------------------------------------------
# Forward pass
# ---------------------------------------------------------------------------

def bottleneck_forward(x, blk):
    p = blk['params']
    stride, dilation, mg = blk['stride'], blk['dilation'], blk['multi_grid']
    residual = x
    out = conv_bn_act(x, p['w1'], p['s1'], p['b1'], relu=True)                 # 1x1
    d = dilation * mg
    out = conv_bn_act(out, p['w2'], p['s2'], p['b2'],
                      stride=stride, dilation=d, padding=d, relu=True)         # 3x3
    if blk['has_ds']:
        residual = conv_bn_act(x, p['wd'], p['sd'], p['bd'],
                               stride=stride, relu=False)                      # 1x1 downsample
    # conv3 + bn3 + residual add + relu, fused in one kernel epilogue
    out = conv_bn_act(out, p['w3'], p['s3'], p['b3'], relu=True, residual=residual)
    return out


def resnet_forward(x_nchw, params):
    x = jnp.transpose(x_nchw, (0, 2, 3, 1)).astype(jnp.bfloat16)  # NCHW -> NHWC
    x = conv_bn_act(x, params['conv1'], params['s1'], params['b1'],
                    stride=2, padding=1, relu=True)
    x = conv_bn_act(x, params['conv2'], params['s2'], params['b2'],
                    stride=1, padding=1, relu=True)
    x = conv_bn_act(x, params['conv3'], params['s3'], params['b3'],
                    stride=1, padding=1, relu=True)
    x = maxpool3x3_s2_ceil(x)
    for layer in params['layers']:
        for blk in layer:
            x = bottleneck_forward(x, blk)
    # NHWC -> NCHW, back to f32 at the module boundary
    return jnp.transpose(x, (0, 3, 1, 2)).astype(jnp.float32)


# ---------------------------------------------------------------------------

if __name__ == "__main__":
    root = jax.random.PRNGKey(0)
    x_key, param_key = jax.random.split(root)

    # PyTorch-style NCHW input; 3 input channels are required by conv1.
    x = jax.random.normal(x_key, (2, 3, 32, 32), jnp.float32)

    kg = KeyGen(param_key)
    params = build_params(kg, layers=(1, 1, 1, 1))

    out = resnet_forward(x, params)
    out = jax.block_until_ready(out)

    # 32x32 -> stem/2 -> 16x16 -> maxpool(ceil)/2 -> 9x9 -> layer2/2 -> 5x5 ; 512*4 channels
    assert out.shape == (2, 2048, 5, 5), out.shape
    assert bool(jnp.isfinite(out).all())
    print("KERNEL_OK")
</pallas_src>

<mosaic_0001>
module attributes {stable_mosaic.version = 11 : i64} {
  func.func @kernel(%arg0: i32, %arg1: i32, %arg2: i32, %arg3: memref<512x27xbf16, #tpu.memory_space<vmem>>, %arg4: memref<27x128xbf16, #tpu.memory_space<vmem>>, %arg5: memref<1x128xf32, #tpu.memory_space<vmem>>, %arg6: memref<512x128xbf16, #tpu.memory_space<vmem>>, %arg7: memref<512x128xf32, #tpu.memory_space<vmem>>) attributes {dimension_semantics = [#tpu.dimension_semantics<parallel>, #tpu.dimension_semantics<parallel>, #tpu.dimension_semantics<arbitrary>], iteration_bounds = array<i64: 1, 1, 1>, scalar_prefetch = 0 : i64, scratch_operands = 1 : i64, tpu.core_type = #tpu.core_type<tc>, window_params = [{transform_indices = @transform_0, window_bounds = array<i64: 512, 27>}, {transform_indices = @transform_1, window_bounds = array<i64: 27, 128>}, {transform_indices = @transform_2, window_bounds = array<i64: 1, 128>}, {transform_indices = @transform_3, window_bounds = array<i64: 512, 128>}]} {
    %c0_i32 = arith.constant 0 : i32
    %0 = arith.cmpi eq, %arg2, %c0_i32 : i32
    %1 = arith.extui %0 : i1 to i32
    %c0_i32_0 = arith.constant 0 : i32
    %2 = arith.cmpi ne, %1, %c0_i32_0 : i32
    scf.if %2 {
      %cst_10 = arith.constant 0.000000e+00 : f32
      %12 = vector.broadcast %cst_10 : f32 to vector<512x128xf32>
      %c0_11 = arith.constant 0 : index
      %c0_12 = arith.constant 0 : index
      %13 = vector.load %arg7[%c0_11, %c0_12] : memref<512x128xf32, #tpu.memory_space<vmem>>, vector<512x128xf32>
      tpu.vector_store %arg7[%c0_11, %c0_12], %12 {strides = array<i32>} : memref<512x128xf32, #tpu.memory_space<vmem>>, vector<512x128xf32>,
    } else {
    }
    %c0 = arith.constant 0 : index
    %c0_1 = arith.constant 0 : index
    %3 = vector.load %arg7[%c0, %c0_1] : memref<512x128xf32, #tpu.memory_space<vmem>>, vector<512x128xf32>
    %c0_2 = arith.constant 0 : index
    %c0_3 = arith.constant 0 : index
    %4 = vector.load %arg3[%c0_2, %c0_3] : memref<512x27xbf16, #tpu.memory_space<vmem>>, vector<512x27xbf16>
    %c0_4 = arith.constant 0 : index
    %c0_5 = arith.constant 0 : index
    %5 = vector.load %arg4[%c0_4, %c0_5] : memref<27x128xbf16, #tpu.memory_space<vmem>>, vector<27x128xbf16>
    %cst = arith.constant dense<0.000000e+00> : vector<512x128xf32>
    %6 = tpu.matmul %4, %5, %cst {dimension_numbers = #tpu.dot_dimension_numbers<[1], [0], [0], [1], [0, 0, 1, 1], [], []>} : vector<512x27xbf16>, vector<27x128xbf16>, vector<512x128xf32> -> vector<512x128xf32>
    %7 = arith.addf %3, %6 : vector<512x128xf32>
    %c0_6 = arith.constant 0 : index
    %c0_7 = arith.constant 0 : index
    %8 = vector.load %arg7[%c0_6, %c0_7] : memref<512x128xf32, #tpu.memory_space<vmem>>, vector<512x128xf32>
    tpu.vector_store %arg7[%c0_6, %c0_7], %7 {strides = array<i32>} : memref<512x128xf32, #tpu.memory_space<vmem>>, vector<512x128xf32>,
    %c0_i32_8 = arith.constant 0 : i32
    %9 = arith.cmpi eq, %arg2, %c0_i32_8 : i32
    %10 = arith.extui %9 : i1 to i32
    %c0_i32_9 = arith.constant 0 : i32
    %11 = arith.cmpi ne, %10, %c0_i32_9 : i32
    scf.if %11 {
      %c0_10 = arith.constant 0 : index
      %c0_11 = arith.constant 0 : index
      %12 = vector.load %arg7[%c0_10, %c0_11] : memref<512x128xf32, #tpu.memory_space<vmem>>, vector<512x128xf32>
      %c0_12 = arith.constant 0 : index
      %c0_13 = arith.constant 0 : index
      %13 = vector.load %arg5[%c0_12, %c0_13] : memref<1x128xf32, #tpu.memory_space<vmem>>, vector<1x128xf32>
      %14 = vector.broadcast %13 : vector<1x128xf32> to vector<512x128xf32>
      %15 = arith.addf %12, %14 : vector<512x128xf32>
      %cst_14 = arith.constant 0.000000e+00 : f32
      %16 = vector.broadcast %cst_14 : f32 to vector<512x128xf32>
      %17 = arith.maximumf %15, %16 : vector<512x128xf32>
      %18 = arith.truncf %17 : vector<512x128xf32> to vector<512x128xbf16>
      %c0_15 = arith.constant 0 : index
      %c0_16 = arith.constant 0 : index
      %19 = vector.load %arg6[%c0_15, %c0_16] : memref<512x128xbf16, #tpu.memory_space<vmem>>, vector<512x128xbf16>
      tpu.vector_store %arg6[%c0_15, %c0_16], %18 {strides = array<i32>} : memref<512x128xbf16, #tpu.memory_space<vmem>>, vector<512x128xbf16>,
    } else {
    }
    return
  }
  func.func @transform_0(%arg0: i32, %arg1: i32, %arg2: i32) -> (i32, i32) {
    %c0_i32 = arith.constant 0 : i32
    return %arg0, %arg2 : i32, i32
  }
  func.func @transform_1(%arg0: i32, %arg1: i32, %arg2: i32) -> (i32, i32) {
    %c0_i32 = arith.constant 0 : i32
    return %arg2, %arg1 : i32, i32
  }
  func.func @transform_2(%arg0: i32, %arg1: i32, %arg2: i32) -> (i32, i32) {
    %c0_i32 = arith.constant 0 : i32
    %c0_i32_0 = arith.constant 0 : i32
    return %c0_i32, %arg1 : i32, i32
  }
  func.func @transform_3(%arg0: i32, %arg1: i32, %arg2: i32) -> (i32, i32) {
    %c0_i32 = arith.constant 0 : i32
    return %arg0, %arg1 : i32, i32
  }
}

</mosaic_0001>

<llo_original>
// kernel: tpu_custom_call.1
$region0: #{tpu_custom_call.1}
  #allocation0 [shape = 'u32[]', space=smem, size = 0x4, offset = 0x4, fixed_abs, tag = 'smem constant byte address 0x4 - core index']
  #allocation1 [shape = 'u32[72,128]{1,0:T(1,128)}', space=vmem, size = 0x9000, scoped, tag = 'internal scratch']
  #allocation2 [shape = 'f32[512,128]{1,0:T(8,128)}', space=vmem, size = 0x40000, scoped, tag = 'scratch operand']
  %s0 = inlined_call_operand.vmem [shape: bf16[512,27], index: 0, kind: input, shape index: {}]
  %s1 = inlined_call_operand.vmem [shape: bf16[27,128], index: 1, kind: input, shape index: {}]
  %s2 = inlined_call_operand.vmem [shape: f32[1,128], index: 2, kind: input, shape index: {}]
  %s3 = inlined_call_operand.hbm [shape: bf16[512,128], index: 3, kind: output, shape index: {}]
  %s4 = sld [smem:[#allocation0]]
  $region30: #{tpu_custom_call.1} parent=0
    _
  %s6 = ssub.s32 1, %s4
  %s7 = scalar_select 0, %s6, %s4
  $region1: #{tpu_custom_call.1} parent=0
    #allocation3 [shape = 'u8[131072]{0}', space=vmem, size = 0x20000, scoped, tag = 'output window, operand 0, single buffered']
    #allocation4 [shape = 's32[1]{0}', space=sflag, size = 0x4, scoped, tag = 'scoped memory for tpu_custom_call.1']
    %8 = vsyncpa [#allocation4], 0
    // Predicated region
    $region2: #{tpu_custom_call.1} parent=1 // pred_check
      _
    $region3: #{tpu_custom_call.1} parent=1 // pred_check_branch
      %10 = sbr.rel (0) target = $region5
    $region4: #{tpu_custom_call.1} parent=1 // pred_region
      _
    $region5: #{tpu_custom_call.1} parent=1 // pred_fallthru
      _
    // Predicated region
    $region6: #{tpu_custom_call.1} parent=1 // pred_check
      _
    $region7: #{tpu_custom_call.1} parent=1 // pred_check_branch
      %12 = sbr.rel (0) target = $region9
    $region8: #{tpu_custom_call.1} parent=1 // pred_region
      _
    $region9: #{tpu_custom_call.1} parent=1 // pred_fallthru
      _
    // Predicated region
    $region10: #{tpu_custom_call.1} parent=1 // pred_check
      _
    $region11: #{tpu_custom_call.1} parent=1 // pred_check_branch
      %14 = sbr.rel (0) target = $region13
    $region12: #{tpu_custom_call.1} parent=1 // pred_region
      _
    $region13: #{tpu_custom_call.1} parent=1 // pred_fallthru
      _
    %p16 = scmp.eq.s32.totalorder 0, 0
    // Predicated region
    $region14: #{tpu_custom_call.1} parent=1 // pred_check
      %p17 = pneg %p16
    $region15: #{tpu_custom_call.1} parent=1 // pred_check_branch
      %19 = sbr.rel (%p17) target = $region17
    $region16: #{tpu_custom_call.1} parent=1 // pred_region
      %20 = vst [vmem:[#allocation2] sm:$0xff] 0.0
      %21 = vst [vmem:[#allocation2 + $0x8] sm:$0xff] 0.0
      %22 = vst [vmem:[#allocation2 + $0x10] sm:$0xff] 0.0
      %23 = vst [vmem:[#allocation2 + $0x18] sm:$0xff] 0.0
      %24 = vst [vmem:[#allocation2 + $0x20] sm:$0xff] 0.0
      %25 = vst [vmem:[#allocation2 + $0x28] sm:$0xff] 0.0
      %26 = vst [vmem:[#allocation2 + $0x30] sm:$0xff] 0.0
      %27 = vst [vmem:[#allocation2 + $0x38] sm:$0xff] 0.0
      %28 = vst [vmem:[#allocation2 + $0x40] sm:$0xff] 0.0
      %29 = vst [vmem:[#allocation2 + $0x48] sm:$0xff] 0.0
      %30 = vst [vmem:[#allocation2 + $0x50] sm:$0xff] 0.0
      %31 = vst [vmem:[#allocation2 + $0x58] sm:$0xff] 0.0
      %32 = vst [vmem:[#allocation2 + $0x60] sm:$0xff] 0.0
      %33 = vst [vmem:[#allocation2 + $0x68] sm:$0xff] 0.0
      %34 = vst [vmem:[#allocation2 + $0x70] sm:$0xff] 0.0
      %35 = vst [vmem:[#allocation2 + $0x78] sm:$0xff] 0.0
      %36 = vst [vmem:[#allocation2 + $0x80] sm:$0xff] 0.0
      %37 = vst [vmem:[#allocation2 + $0x88] sm:$0xff] 0.0
      %38 = vst [vmem:[#allocation2 + $0x90] sm:$0xff] 0.0
      %39 = vst [vmem:[#allocation2 + $0x98] sm:$0xff] 0.0
      %40 = vst [vmem:[#allocation2 + $0xa0] sm:$0xff] 0.0
      %41 = vst [vmem:[#allocation2 + $0xa8] sm:$0xff] 0.0
      %42 = vst [vmem:[#allocation2 + $0xb0] sm:$0xff] 0.0
      %43 = vst [vmem:[#allocation2 + $0xb8] sm:$0xff] 0.0
      %44 = vst [vmem:[#allocation2 + $0xc0] sm:$0xff] 0.0
      %45 = vst [vmem:[#allocation2 + $0xc8] sm:$0xff] 0.0
      %46 = vst [vmem:[#allocation2 + $0xd0] sm:$0xff] 0.0
      %47 = vst [vmem:[#allocation2 + $0xd8] sm:$0xff] 0.0
      %48 = vst [vmem:[#allocation2 + $0xe0] sm:$0xff] 0.0
      %49 = vst [vmem:[#allocation2 + $0xe8] sm:$0xff] 0.0
      %50 = vst [vmem:[#allocation2 + $0xf0] sm:$0xff] 0.0
      %51 = vst [vmem:[#allocation2 + $0xf8] sm:$0xff] 0.0
      %52 = vst [vmem:[#allocation2 + $0x100] sm:$0xff] 0.0
      %53 = vst [vmem:[#allocation2 + $0x108] sm:$0xff] 0.0
      %54 = vst [vmem:[#allocation2 + $0x110] sm:$0xff] 0.0
      %55 = vst [vmem:[#allocation2 + $0x118] sm:$0xff] 0.0
      %56 = vst [vmem:[#allocation2 + $0x120] sm:$0xff] 0.0
      %57 = vst [vmem:[#allocation2 + $0x128] sm:$0xff] 0.0
      %58 = vst [vmem:[#allocation2 + $0x130] sm:$0xff] 0.0
      %59 = vst [vmem:[#allocation2 + $0x138] sm:$0xff] 0.0
      %60 = vst [vmem:[#allocation2 + $0x140] sm:$0xff] 0.0
      %61 = vst [vmem:[#allocation2 + $0x148] sm:$0xff] 0.0
      %62 = vst [vmem:[#allocation2 + $0x150] sm:$0xff] 0.0
      %63 = vst [vmem:[#allocation2 + $0x158] sm:$0xff] 0.0
      %64 = vst [vmem:[#allocation2 + $0x160] sm:$0xff] 0.0
      %65 = vst [vmem:[#allocation2 + $0x168] sm:$0xff] 0.0
      %66 = vst [vmem:[#allocation2 + $0x170] sm:$0xff] 0.0
      %67 = vst [vmem:[#allocation2 + $0x178] sm:$0xff] 0.0
      %68 = vst [vmem:[#allocation2 + $0x180] sm:$0xff] 0.0
      %69 = vst [vmem:[#allocation2 + $0x188] sm:$0xff] 0.0
      %70 = vst [vmem:[#allocation2 + $0x190] sm:$0xff] 0.0
      %71 = vst [vmem:[#allocation2 + $0x198] sm:$0xff] 0.0
      %72 = vst [vmem:[#allocation2 + $0x1a0] sm:$0xff] 0.0
      %73 = vst [vmem:[#allocation2 + $0x1a8] sm:$0xff] 0.0
      %74 = vst [vmem:[#allocation2 + $0x1b0] sm:$0xff] 0.0
      %75 = vst [vmem:[#allocation2 + $0x1b8] sm:$0xff] 0.0
      %76 = vst [vmem:[#allocation2 + $0x1c0] sm:$0xff] 0.0
      %77 = vst [vmem:[#allocation2 + $0x1c8] sm:$0xff] 0.0
      %78 = vst [vmem:[#allocation2 + $0x1d0] sm:$0xff] 0.0
      %79 = vst [vmem:[#allocation2 + $0x1d8] sm:$0xff] 0.0
      %80 = vst [vmem:[#allocation2 + $0x1e0] sm:$0xff] 0.0
      %81 = vst [vmem:[#allocation2 + $0x1e8] sm:$0xff] 0.0
      %82 = vst [vmem:[#allocation2 + $0x1f0] sm:$0xff] 0.0
      %83 = vst [vmem:[#allocation2 + $0x1f8] sm:$0xff] 0.0
    $region17: #{tpu_custom_call.1} parent=1 // pred_fallthru
      _
    %v84 = vld [vmem:[#allocation2] sm:$0xff]
    %v85 = vld [vmem:[#allocation2 + $0x8] sm:$0xff]
    %v86 = vld [vmem:[#allocation2 + $0x10] sm:$0xff]
    %v87 = vld [vmem:[#allocation2 + $0x18] sm:$0xff]
    %v88 = vld [vmem:[#allocation2 + $0x20] sm:$0xff]
    %v89 = vld [vmem:[#allocation2 + $0x28] sm:$0xff]
    %v90 = vld [vmem:[#allocation2 + $0x30] sm:$0xff]
    %v91 = vld [vmem:[#allocation2 + $0x38] sm:$0xff]
    %v92 = vld [vmem:[#allocation2 + $0x40] sm:$0xff]
    %v93 = vld [vmem:[#allocation2 + $0x48] sm:$0xff]
    %v94 = vld [vmem:[#allocation2 + $0x50] sm:$0xff]
    %v95 = vld [vmem:[#allocation2 + $0x58] sm:$0xff]
    %v96 = vld [vmem:[#allocation2 + $0x60] sm:$0xff]
    %v97 = vld [vmem:[#allocation2 + $0x68] sm:$0xff]
    %v98 = vld [vmem:[#allocation2 + $0x70] sm:$0xff]
    %v99 = vld [vmem:[#allocation2 + $0x78] sm:$0xff]
    %v100 = vld [vmem:[#allocation2 + $0x80] sm:$0xff]
    %v101 = vld [vmem:[#allocation2 + $0x88] sm:$0xff]
    %v102 = vld [vmem:[#allocation2 + $0x90] sm:$0xff]
    %v103 = vld [vmem:[#allocation2 + $0x98] sm:$0xff]
    %v104 = vld [vmem:[#allocation2 + $0xa0] sm:$0xff]
    %v105 = vld [vmem:[#allocation2 + $0xa8] sm:$0xff]
    %v106 = vld [vmem:[#allocation2 + $0xb0] sm:$0xff]
    %v107 = vld [vmem:[#allocation2 + $0xb8] sm:$0xff]
    %v108 = vld [vmem:[#allocation2 + $0xc0] sm:$0xff]
    %v109 = vld [vmem:[#allocation2 + $0xc8] sm:$0xff]
    %v110 = vld [vmem:[#allocation2 + $0xd0] sm:$0xff]
    %v111 = vld [vmem:[#allocation2 + $0xd8] sm:$0xff]
    %v112 = vld [vmem:[#allocation2 + $0xe0] sm:$0xff]
    %v113 = vld [vmem:[#allocation2 + $0xe8] sm:$0xff]
    %v114 = vld [vmem:[#allocation2 + $0xf0] sm:$0xff]
    %v115 = vld [vmem:[#allocation2 + $0xf8] sm:$0xff]
    %v116 = vld [vmem:[#allocation2 + $0x100] sm:$0xff]
    %v117 = vld [vmem:[#allocation2 + $0x108] sm:$0xff]
    %v118 = vld [vmem:[#allocation2 + $0x110] sm:$0xff]
    %v119 = vld [vmem:[#allocation2 + $0x118] sm:$0xff]
    %v120 = vld [vmem:[#allocation2 + $0x120] sm:$0xff]
    %v121 = vld [vmem:[#allocation2 + $0x128] sm:$0xff]
    %v122 = vld [vmem:[#allocation2 + $0x130] sm:$0xff]
    %v123 = vld [vmem:[#allocation2 + $0x138] sm:$0xff]
    %v124 = vld [vmem:[#allocation2 + $0x140] sm:$0xff]
    %v125 = vld [vmem:[#allocation2 + $0x148] sm:$0xff]
    %v126 = vld [vmem:[#allocation2 + $0x150] sm:$0xff]
    %v127 = vld [vmem:[#allocation2 + $0x158] sm:$0xff]
    %v128 = vld [vmem:[#allocation2 + $0x160] sm:$0xff]
    %v129 = vld [vmem:[#allocation2 + $0x168] sm:$0xff]
    %v130 = vld [vmem:[#allocation2 + $0x170] sm:$0xff]
    %v131 = vld [vmem:[#allocation2 + $0x178] sm:$0xff]
    %v132 = vld [vmem:[#allocation2 + $0x180] sm:$0xff]
    %v133 = vld [vmem:[#allocation2 + $0x188] sm:$0xff]
    %v134 = vld [vmem:[#allocation2 + $0x190] sm:$0xff]
    %v135 = vld [vmem:[#allocation2 + $0x198] sm:$0xff]
    %v136 = vld [vmem:[#allocation2 + $0x1a0] sm:$0xff]
    %v137 = vld [vmem:[#allocation2 + $0x1a8] sm:$0xff]
    %v138 = vld [vmem:[#allocation2 + $0x1b0] sm:$0xff]
    %v139 = vld [vmem:[#allocation2 + $0x1b8] sm:$0xff]
    %v140 = vld [vmem:[#allocation2 + $0x1c0] sm:$0xff]
    %v141 = vld [vmem:[#allocation2 + $0x1c8] sm:$0xff]
    %v142 = vld [vmem:[#allocation2 + $0x1d0] sm:$0xff]
    %v143 = vld [vmem:[#allocation2 + $0x1d8] sm:$0xff]
    %v144 = vld [vmem:[#allocation2 + $0x1e0] sm:$0xff]
    %v145 = vld [vmem:[#allocation2 + $0x1e8] sm:$0xff]
    %v146 = vld [vmem:[#allocation2 + $0x1f0] sm:$0xff]
    %v147 = vld [vmem:[#allocation2 + $0x1f8] sm:$0xff]
    %v148 = vld [vmem:[%s0] sm:$0xf]
    %v149 = vld [vmem:[%s0 + $0x4] sm:$0xf]
    %v150 = vld [vmem:[%s0 + $0x8] sm:$0xf]
    %v151 = vld [vmem:[%s0 + $0xc] sm:$0xf]
    %v152 = vld [vmem:[%s0 + $0x10] sm:$0xf]
    %v153 = vld [vmem:[%s0 + $0x14] sm:$0xf]
    %v154 = vld [vmem:[%s0 + $0x18] sm:$0xf]
    %v155 = vld [vmem:[%s0 + $0x1c] sm:$0xf]
    %v156 = vld [vmem:[%s0 + $0x20] sm:$0xf]
    %v157 = vld [vmem:[%s0 + $0x24] sm:$0xf]
    %v158 = vld [vmem:[%s0 + $0x28] sm:$0xf]
    %v159 = vld [vmem:[%s0 + $0x2c] sm:$0xf]
    %v160 = vld [vmem:[%s0 + $0x30] sm:$0xf]
    %v161 = vld [vmem:[%s0 + $0x34] sm:$0xf]
    %v162 = vld [vmem:[%s0 + $0x38] sm:$0xf]
    %v163 = vld [vmem:[%s0 + $0x3c] sm:$0xf]
    %v164 = vld [vmem:[%s0 + $0x40] sm:$0xf]
    %v165 = vld [vmem:[%s0 + $0x44] sm:$0xf]
    %v166 = vld [vmem:[%s0 + $0x48] sm:$0xf]
    %v167 = vld [vmem:[%s0 + $0x4c] sm:$0xf]
    %v168 = vld [vmem:[%s0 + $0x50] sm:$0xf]
    %v169 = vld [vmem:[%s0 + $0x54] sm:$0xf]
    %v170 = vld [vmem:[%s0 + $0x58] sm:$0xf]
    %v171 = vld [vmem:[%s0 + $0x5c] sm:$0xf]
    %v172 = vld [vmem:[%s0 + $0x60] sm:$0xf]
    %v173 = vld [vmem:[%s0 + $0x64] sm:$0xf]
    %v174 = vld [vmem:[%s0 + $0x68] sm:$0xf]
    %v175 = vld [vmem:[%s0 + $0x6c] sm:$0xf]
    %v176 = vld [vmem:[%s0 + $0x70] sm:$0xf]
    %v177 = vld [vmem:[%s0 + $0x74] sm:$0xf]
    %v178 = vld [vmem:[%s0 + $0x78] sm:$0xf]
    %v179 = vld [vmem:[%s0 + $0x7c] sm:$0xf]
    %v180 = vld [vmem:[%s0 + $0x80] sm:$0xf]
    %v181 = vld [vmem:[%s0 + $0x84] sm:$0xf]
    %v182 = vld [vmem:[%s0 + $0x88] sm:$0xf]
    %v183 = vld [vmem:[%s0 + $0x8c] sm:$0xf]
    %v184 = vld [vmem:[%s0 + $0x90] sm:$0xf]
    %v185 = vld [vmem:[%s0 + $0x94] sm:$0xf]
    %v186 = vld [vmem:[%s0 + $0x98] sm:$0xf]
    %v187 = vld [vmem:[%s0 + $0x9c] sm:$0xf]
    %v188 = vld [vmem:[%s0 + $0xa0] sm:$0xf]
    %v189 = vld [vmem:[%s0 + $0xa4] sm:$0xf]
    %v190 = vld [vmem:[%s0 + $0xa8] sm:$0xf]
    %v191 = vld [vmem:[%s0 + $0xac] sm:$0xf]
    %v192 = vld [vmem:[%s0 + $0xb0] sm:$0xf]
    %v193 = vld [vmem:[%s0 + $0xb4] sm:$0xf]
    %v194 = vld [vmem:[%s0 + $0xb8] sm:$0xf]
    %v195 = vld [vmem:[%s0 + $0xbc] sm:$0xf]
    %v196 = vld [vmem:[%s0 + $0xc0] sm:$0xf]
    %v197 = vld [vmem:[%s0 + $0xc4] sm:$0xf]
    %v198 = vld [vmem:[%s0 + $0xc8] sm:$0xf]
    %v199 = vld [vmem:[%s0 + $0xcc] sm:$0xf]
    %v200 = vld [vmem:[%s0 + $0xd0] sm:$0xf]
    %v201 = vld [vmem:[%s0 + $0xd4] sm:$0xf]
    %v202 = vld [vmem:[%s0 + $0xd8] sm:$0xf]
    %v203 = vld [vmem:[%s0 + $0xdc] sm:$0xf]
    %v204 = vld [vmem:[%s0 + $0xe0] sm:$0xf]
    %v205 = vld [vmem:[%s0 + $0xe4] sm:$0xf]
    %v206 = vld [vmem:[%s0 + $0xe8] sm:$0xf]
    %v207 = vld [vmem:[%s0 + $0xec] sm:$0xf]
    %v208 = vld [vmem:[%s0 + $0xf0] sm:$0xf]
    %v209 = vld [vmem:[%s0 + $0xf4] sm:$0xf]
    %v210 = vld [vmem:[%s0 + $0xf8] sm:$0xf]
    %v211 = vld [vmem:[%s0 + $0xfc] sm:$0xf]
    %v212 = vld [vmem:[%s1] sm:$0xf]
    %v213 = vld [vmem:[%s1 + $0x4] sm:$0xf]
    %v214 = vld [vmem:[%s1 + $0x8] sm:$0xf]
    %v215 = vld [vmem:[%s1 + $0xc] sm:$0x3]
    %v280 = vunpack.c.l.b16 %v148
    %v281 = vunpack.c.l.b16 %v149
    %v282 = vunpack.c.l.b16 %v150
    %v283 = vunpack.c.l.b16 %v151
    %v284 = vunpack.c.l.b16 %v152
    %v285 = vunpack.c.l.b16 %v153
    %v286 = vunpack.c.l.b16 %v154
    %v287 = vunpack.c.l.b16 %v155
    %v288 = vunpack.c.l.b16 %v156
    %v289 = vunpack.c.l.b16 %v157
    %v290 = vunpack.c.l.b16 %v158
    %v291 = vunpack.c.l.b16 %v159
    %v292 = vunpack.c.l.b16 %v160
    %v293 = vunpack.c.l.b16 %v161
    %v294 = vunpack.c.l.b16 %v162
    %v295 = vunpack.c.l.b16 %v163
    %v296 = vunpack.c.l.b16 %v164
    %v297 = vunpack.c.l.b16 %v165
    %v298 = vunpack.c.l.b16 %v166
    %v299 = vunpack.c.l.b16 %v167
    %v300 = vunpack.c.l.b16 %v168
    %v301 = vunpack.c.l.b16 %v169
    %v302 = vunpack.c.l.b16 %v170
    %v303 = vunpack.c.l.b16 %v171
    %v304 = vunpack.c.l.b16 %v172
    %v305 = vunpack.c.l.b16 %v173
    %v306 = vunpack.c.l.b16 %v174
    %v307 = vunpack.c.l.b16 %v175
    %v308 = vunpack.c.l.b16 %v176
    %v309 = vunpack.c.l.b16 %v177
    %v310 = vunpack.c.l.b16 %v178
    %v311 = vunpack.c.l.b16 %v179
    %v312 = vunpack.c.l.b16 %v180
    %v313 = vunpack.c.l.b16 %v181
    %v314 = vunpack.c.l.b16 %v182
    %v315 = vunpack.c.l.b16 %v183
    %v316 = vunpack.c.l.b16 %v184
    %v317 = vunpack.c.l.b16 %v185
    %v318 = vunpack.c.l.b16 %v186
    %v319 = vunpack.c.l.b16 %v187
    %v320 = vunpack.c.l.b16 %v188
    %v321 = vunpack.c.l.b16 %v189
    %v322 = vunpack.c.l.b16 %v190
    %v323 = vunpack.c.l.b16 %v191
    %v324 = vunpack.c.l.b16 %v192
    %v325 = vunpack.c.l.b16 %v193
    %v326 = vunpack.c.l.b16 %v194
    %v327 = vunpack.c.l.b16 %v195
    %v328 = vunpack.c.l.b16 %v196
    %v329 = vunpack.c.l.b16 %v197
    %v330 = vunpack.c.l.b16 %v198
    %v331 = vunpack.c.l.b16 %v199
    %v332 = vunpack.c.l.b16 %v200
    %v333 = vunpack.c.l.b16 %v201
    %v334 = vunpack.c.l.b16 %v202
    %v335 = vunpack.c.l.b16 %v203
    %v336 = vunpack.c.l.b16 %v204
    %v337 = vunpack.c.l.b16 %v205
    %v338 = vunpack.c.l.b16 %v206
    %v339 = vunpack.c.l.b16 %v207
    %v340 = vunpack.c.l.b16 %v208
    %v341 = vunpack.c.l.b16 %v209
    %v342 = vunpack.c.l.b16 %v210
    %v343 = vunpack.c.l.b16 %v211
    %v344 = vpack.c.b16 %v281, %v280
    %v345 = vpack.c.b16 %v283, %v282
    %v346 = vpack.c.b16 %v285, %v284
    %v347 = vpack.c.b16 %v287, %v286
    %v348 = vpack.c.b16 %v289, %v288
    %v349 = vpack.c.b16 %v291, %v290
    %v350 = vpack.c.b16 %v293, %v292
    %v351 = vpack.c.b16 %v295, %v294
    %v352 = vpack.c.b16 %v297, %v296
    %v353 = vpack.c.b16 %v299, %v298
    %v354 = vpack.c.b16 %v301, %v300
    %v355 = vpack.c.b16 %v303, %v302
    %v356 = vpack.c.b16 %v305, %v304
    %v357 = vpack.c.b16 %v307, %v306
    %v358 = vpack.c.b16 %v309, %v308
    %v359 = vpack.c.b16 %v311, %v310
    %v360 = vpack.c.b16 %v313, %v312
    %v361 = vpack.c.b16 %v315, %v314
    %v362 = vpack.c.b16 %v317, %v316
    %v363 = vpack.c.b16 %v319, %v318
    %v364 = vpack.c.b16 %v321, %v320
    %v365 = vpack.c.b16 %v323, %v322
    %v366 = vpack.c.b16 %v325, %v324
    %v367 = vpack.c.b16 %v327, %v326
    %v368 = vpack.c.b16 %v329, %v328
    %v369 = vpack.c.b16 %v331, %v330
    %v370 = vpack.c.b16 %v333, %v332
    %v371 = vpack.c.b16 %v335, %v334
    %v372 = vpack.c.b16 %v337, %v336
    %v373 = vpack.c.b16 %v339, %v338
    %v374 = vpack.c.b16 %v341, %v340
    %v375 = vpack.c.b16 %v343, %v342
    %v380 = vunpack.c.l.b16 %v212
    %v381 = vunpack.c.l.b16 %v213
    %v382 = vunpack.c.l.b16 %v214
    %v383 = vunpack.c.l.b16 %v215
    %v384 = vpack.c.b16 %v381, %v380
    %v385 = vpack.c.b16 %v383, %v382
    %vm387 = vcmask 220160
    %v389 = vsel %vm387, %v344, 0
    %v392 = vsel %vm387, %v345, 0
    %v395 = vsel %vm387, %v346, 0
    %v398 = vsel %vm387, %v347, 0
    %v401 = vsel %vm387, %v348, 0
    %v404 = vsel %vm387, %v349, 0
    %v407 = vsel %vm387, %v350, 0
    %v410 = vsel %vm387, %v351, 0
    %v413 = vsel %vm387, %v352, 0
    %v416 = vsel %vm387, %v353, 0
    %v419 = vsel %vm387, %v354, 0
    %v422 = vsel %vm387, %v355, 0
    %v425 = vsel %vm387, %v356, 0
    %v428 = vsel %vm387, %v357, 0
    %v431 = vsel %vm387, %v358, 0
    %v434 = vsel %vm387, %v359, 0
    %v437 = vsel %vm387, %v360, 0
    %v440 = vsel %vm387, %v361, 0
    %v443 = vsel %vm387, %v362, 0
    %v446 = vsel %vm387, %v363, 0
    %v449 = vsel %vm387, %v364, 0
    %v452 = vsel %vm387, %v365, 0
    %v455 = vsel %vm387, %v366, 0
    %v458 = vsel %vm387, %v367, 0
    %v461 = vsel %vm387, %v368, 0
    %v464 = vsel %vm387, %v369, 0
    %v467 = vsel %vm387, %v370, 0
    %v470 = vsel %vm387, %v371, 0
    %v473 = vsel %vm387, %v372, 0
    %v476 = vsel %vm387, %v373, 0
    %v479 = vsel %vm387, %v374, 0
    %v482 = vsel %vm387, %v375, 0
    %vm484 = vcmask 1044480
    %vm485 = vcmask 1045504
    %v486 = vsel %vm484, 4294967295, 65535
    %v487 = vsel %vm485, %v486, 0
    %v489 = vand.u32 %v385, %v487
    %491 = vmatpush.bf16.msra.mxu0 0
    %492 = vmatpush.bf16.msra.mxu0 0
    %493 = vmatpush.bf16.msra.mxu0 0
    %494 = vmatpush.bf16.msra.mxu0 0
    %495 = vmatpush.bf16.msra.mxu0 0
    %496 = vmatpush.bf16.msra.mxu0 0
    %497 = vmatpush.bf16.msra.mxu0 %v489
    %498 = vmatpush.bf16.msra.mxu0 %v384
    %499 = vmatmul.bf16.gmra.mxu0 %v389
    %v500 = vpop.f32.mrf.mxu0
    %v501 = vadd.f32 0.0, %v500
    %v502 = vpop.f32.mrf.mxu0
    %v503 = vadd.f32 0.0, %v502
    %504 = vmatmul.bf16.gmra.mxu0 %v392
    %v505 = vpop.f32.mrf.mxu0
    %v506 = vadd.f32 0.0, %v505
    %v507 = vpop.f32.mrf.mxu0
    %v508 = vadd.f32 0.0, %v507
    %509 = vmatmul.bf16.gmra.mxu0 %v395
    %v510 = vpop.f32.mrf.mxu0
    %v511 = vadd.f32 0.0, %v510
    %v512 = vpop.f32.mrf.mxu0
    %v513 = vadd.f32 0.0, %v512
    %514 = vmatmul.bf16.gmra.mxu0 %v398
    %v515 = vpop.f32.mrf.mxu0
    %v516 = vadd.f32 0.0, %v515
    %v517 = vpop.f32.mrf.mxu0
    %v518 = vadd.f32 0.0, %v517
    %519 = vmatmul.bf16.gmra.mxu0 %v401
    %v520 = vpop.f32.mrf.mxu0
    %v521 = vadd.f32 0.0, %v520
    %v522 = vpop.f32.mrf.mxu0
    %v523 = vadd.f32 0.0, %v522
    %524 = vmatmul.bf16.gmra.mxu0 %v404
    %v525 = vpop.f32.mrf.mxu0
    %v526 = vadd.f32 0.0, %v525
    %v527 = vpop.f32.mrf.mxu0
    %v528 = vadd.f32 0.0, %v527
    %529 = vmatmul.bf16.gmra.mxu0 %v407
    %v530 = vpop.f32.mrf.mxu0
    %v531 = vadd.f32 0.0, %v530
    %v532 = vpop.f32.mrf.mxu0
    %v533 = vadd.f32 0.0, %v532
    %534 = vmatmul.bf16.gmra.mxu0 %v410
    %v535 = vpop.f32.mrf.mxu0
    %v536 = vadd.f32 0.0, %v535
    %v537 = vpop.f32.mrf.mxu0
    %v538 = vadd.f32 0.0, %v537
    %539 = vmatmul.bf16.gmra.mxu0 %v413
    %v540 = vpop.f32.mrf.mxu0
    %v541 = vadd.f32 0.0, %v540
    %v542 = vpop.f32.mrf.mxu0
    %v543 = vadd.f32 0.0, %v542
    %544 = vmatmul.bf16.gmra.mxu0 %v416
    %v545 = vpop.f32.mrf.mxu0
    %v546 = vadd.f32 0.0, %v545
    %v547 = vpop.f32.mrf.mxu0
    %v548 = vadd.f32 0.0, %v547
    %549 = vmatmul.bf16.gmra.mxu0 %v419
    %v550 = vpop.f32.mrf.mxu0
    %v551 = vadd.f32 0.0, %v550
    %v552 = vpop.f32.mrf.mxu0
    %v553 = vadd.f32 0.0, %v552
    %554 = vmatmul.bf16.gmra.mxu0 %v422
    %v555 = vpop.f32.mrf.mxu0
    %v556 = vadd.f32 0.0, %v555
    %v557 = vpop.f32.mrf.mxu0
    %v558 = vadd.f32 0.0, %v557
    %559 = vmatmul.bf16.gmra.mxu0 %v425
    %v560 = vpop.f32.mrf.mxu0
    %v561 = vadd.f32 0.0, %v560
    %v562 = vpop.f32.mrf.mxu0
    %v563 = vadd.f32 0.0, %v562
    %564 = vmatmul.bf16.gmra.mxu0 %v428
    %v565 = vpop.f32.mrf.mxu0
    %v566 = vadd.f32 0.0, %v565
    %v567 = vpop.f32.mrf.mxu0
    %v568 = vadd.f32 0.0, %v567
    %569 = vmatmul.bf16.gmra.mxu0 %v431
    %v570 = vpop.f32.mrf.mxu0
    %v571 = vadd.f32 0.0, %v570
    %v572 = vpop.f32.mrf.mxu0
    %v573 = vadd.f32 0.0, %v572
    %574 = vmatmul.bf16.gmra.mxu0 %v434
    %v575 = vpop.f32.mrf.mxu0
    %v576 = vadd.f32 0.0, %v575
    %v577 = vpop.f32.mrf.mxu0
    %v578 = vadd.f32 0.0, %v577
    %579 = vmatmul.bf16.gmra.mxu0 %v437
    %v580 = vpop.f32.mrf.mxu0
    %v581 = vadd.f32 0.0, %v580
    %v582 = vpop.f32.mrf.mxu0
    %v583 = vadd.f32 0.0, %v582
    %584 = vmatmul.bf16.gmra.mxu0 %v440
    %v585 = vpop.f32.mrf.mxu0
    %v586 = vadd.f32 0.0, %v585
    %v587 = vpop.f32.mrf.mxu0
    %v588 = vadd.f32 0.0, %v587
    %589 = vmatmul.bf16.gmra.mxu0 %v443
    %v590 = vpop.f32.mrf.mxu0
    %v591 = vadd.f32 0.0, %v590
    %v592 = vpop.f32.mrf.mxu0
    %v593 = vadd.f32 0.0, %v592
    %594 = vmatmul.bf16.gmra.mxu0 %v446
    %v595 = vpop.f32.mrf.mxu0
    %v596 = vadd.f32 0.0, %v595
    %v597 = vpop.f32.mrf.mxu0
    %v598 = vadd.f32 0.0, %v597
    %599 = vmatmul.bf16.gmra.mxu0 %v449
    %v600 = vpop.f32.mrf.mxu0
    %v601 = vadd.f32 0.0, %v600
    %v602 = vpop.f32.mrf.mxu0
    %v603 = vadd.f32 0.0, %v602
    %604 = vmatmul.bf16.gmra.mxu0 %v452
    %v605 = vpop.f32.mrf.mxu0
    %v606 = vadd.f32 0.0, %v605
    %v607 = vpop.f32.mrf.mxu0
    %v608 = vadd.f32 0.0, %v607
    %609 = vmatmul.bf16.gmra.mxu0 %v455
    %v610 = vpop.f32.mrf.mxu0
    %v611 = vadd.f32 0.0, %v610
    %v612 = vpop.f32.mrf.mxu0
    %v613 = vadd.f32 0.0, %v612
    %614 = vmatmul.bf16.gmra.mxu0 %v458
    %v615 = vpop.f32.mrf.mxu0
    %v616 = vadd.f32 0.0, %v615
    %v617 = vpop.f32.mrf.mxu0
    %v618 = vadd.f32 0.0, %v617
    %619 = vmatmul.bf16.gmra.mxu0 %v461
    %v620 = vpop.f32.mrf.mxu0
    %v621 = vadd.f32 0.0, %v620
    %v622 = vpop.f32.mrf.mxu0
    %v623 = vadd.f32 0.0, %v622
    %624 = vmatmul.bf16.gmra.mxu0 %v464
    %v625 = vpop.f32.mrf.mxu0
    %v626 = vadd.f32 0.0, %v625
    %v627 = vpop.f32.mrf.mxu0
    %v628 = vadd.f32 0.0, %v627
    %629 = vmatmul.bf16.gmra.mxu0 %v467
    %v630 = vpop.f32.mrf.mxu0
    %v631 = vadd.f32 0.0, %v630
    %v632 = vpop.f32.mrf.mxu0
    %v633 = vadd.f32 0.0, %v632
    %634 = vmatmul.bf16.gmra.mxu0 %v470
    %v635 = vpop.f32.mrf.mxu0
    %v636 = vadd.f32 0.0, %v635
    %v637 = vpop.f32.mrf.mxu0
    %v638 = vadd.f32 0.0, %v637
    %639 = vmatmul.bf16.gmra.mxu0 %v473
    %v640 = vpop.f32.mrf.mxu0
    %v641 = vadd.f32 0.0, %v640
    %v642 = vpop.f32.mrf.mxu0
    %v643 = vadd.f32 0.0, %v642
    %644 = vmatmul.bf16.gmra.mxu0 %v476
    %v645 = vpop.f32.mrf.mxu0
    %v646 = vadd.f32 0.0, %v645
    %v647 = vpop.f32.mrf.mxu0
    %v648 = vadd.f32 0.0, %v647
    %649 = vmatmul.bf16.gmra.mxu0 %v479
    %v650 = vpop.f32.mrf.mxu0
    %v651 = vadd.f32 0.0, %v650
    %v652 = vpop.f32.mrf.mxu0
    %v653 = vadd.f32 0.0, %v652
    %654 = vmatmul.bf16.gmra.mxu0 %v482
    %v655 = vpop.f32.mrf.mxu0
    %v656 = vadd.f32 0.0, %v655
    %v657 = vpop.f32.mrf.mxu0
    %v658 = vadd.f32 0.0, %v657
    %659 = vdwg.mxu0
    %v660 = vadd.f32 %v84, %v501
    %v661 = vadd.f32 %v85, %v503
    %v662 = vadd.f32 %v86, %v506
    %v663 = vadd.f32 %v87, %v508
    %v664 = vadd.f32 %v88, %v511
    %v665 = vadd.f32 %v89, %v513
    %v666 = vadd.f32 %v90, %v516
    %v667 = vadd.f32 %v91, %v518
    %v668 = vadd.f32 %v92, %v521
    %v669 = vadd.f32 %v93, %v523
    %v670 = vadd.f32 %v94, %v526
    %v671 = vadd.f32 %v95, %v528
    %v672 = vadd.f32 %v96, %v531
    %v673 = vadd.f32 %v97, %v533
    %v674 = vadd.f32 %v98, %v536
    %v675 = vadd.f32 %v99, %v538
    %v676 = vadd.f32 %v100, %v541
    %v677 = vadd.f32 %v101, %v543
    %v678 = vadd.f32 %v102, %v546
    %v679 = vadd.f32 %v103, %v548
    %v680 = vadd.f32 %v104, %v551
    %v681 = vadd.f32 %v105, %v553
    %v682 = vadd.f32 %v106, %v556
    %v683 = vadd.f32 %v107, %v558
    %v684 = vadd.f32 %v108, %v561
    %v685 = vadd.f32 %v109, %v563
    %v686 = vadd.f32 %v110, %v566
    %v687 = vadd.f32 %v111, %v568
    %v688 = vadd.f32 %v112, %v571
    %v689 = vadd.f32 %v113, %v573
    %v690 = vadd.f32 %v114, %v576
    %v691 = vadd.f32 %v115, %v578
    %v692 = vadd.f32 %v116, %v581
    %v693 = vadd.f32 %v117, %v583
    %v694 = vadd.f32 %v118, %v586
    %v695 = vadd.f32 %v119, %v588
    %v696 = vadd.f32 %v120, %v591
    %v697 = vadd.f32 %v121, %v593
    %v698 = vadd.f32 %v122, %v596
    %v699 = vadd.f32 %v123, %v598
    %v700 = vadd.f32 %v124, %v601
    %v701 = vadd.f32 %v125, %v603
    %v702 = vadd.f32 %v126, %v606
    %v703 = vadd.f32 %v127, %v608
    %v704 = vadd.f32 %v128, %v611
    %v705 = vadd.f32 %v129, %v613
    %v706 = vadd.f32 %v130, %v616
    %v707 = vadd.f32 %v131, %v618
    %v708 = vadd.f32 %v132, %v621
    %v709 = vadd.f32 %v133, %v623
    %v710 = vadd.f32 %v134, %v626
    %v711 = vadd.f32 %v135, %v628
    %v712 = vadd.f32 %v136, %v631
    %v713 = vadd.f32 %v137, %v633
    %v714 = vadd.f32 %v138, %v636
    %v715 = vadd.f32 %v139, %v638
    %v716 = vadd.f32 %v140, %v641
    %v717 = vadd.f32 %v141, %v643
    %v718 = vadd.f32 %v142, %v646
    %v719 = vadd.f32 %v143, %v648
    %v720 = vadd.f32 %v144, %v651
    %v721 = vadd.f32 %v145, %v653
    %v722 = vadd.f32 %v146, %v656
    %v723 = vadd.f32 %v147, %v658
    %724 = vst [vmem:[#allocation2] sm:$0xff] %v660
    %725 = vst [vmem:[#allocation2 + $0x8] sm:$0xff] %v661
    %726 = vst [vmem:[#allocation2 + $0x10] sm:$0xff] %v662
    %727 = vst [vmem:[#allocation2 + $0x18] sm:$0xff] %v663
    %728 = vst [vmem:[#allocation2 + $0x20] sm:$0xff] %v664
    %729 = vst [vmem:[#allocation2 + $0x28] sm:$0xff] %v665
    %730 = vst [vmem:[#allocation2 + $0x30] sm:$0xff] %v666
    %731 = vst [vmem:[#allocation2 + $0x38] sm:$0xff] %v667
    %732 = vst [vmem:[#allocation2 + $0x40] sm:$0xff] %v668
    %733 = vst [vmem:[#allocation2 + $0x48] sm:$0xff] %v669
    %734 = vst [vmem:[#allocation2 + $0x50] sm:$0xff] %v670
    %735 = vst [vmem:[#allocation2 + $0x58] sm:$0xff] %v671
    %736 = vst [vmem:[#allocation2 + $0x60] sm:$0xff] %v672
    %737 = vst [vmem:[#allocation2 + $0x68] sm:$0xff] %v673
    %738 = vst [vmem:[#allocation2 + $0x70] sm:$0xff] %v674
    %739 = vst [vmem:[#allocation2 + $0x78] sm:$0xff] %v675
    %740 = vst [vmem:[#allocation2 + $0x80] sm:$0xff] %v676
    %741 = vst [vmem:[#allocation2 + $0x88] sm:$0xff] %v677
    %742 = vst [vmem:[#allocation2 + $0x90] sm:$0xff] %v678
    %743 = vst [vmem:[#allocation2 + $0x98] sm:$0xff] %v679
    %744 = vst [vmem:[#allocation2 + $0xa0] sm:$0xff] %v680
    %745 = vst [vmem:[#allocation2 + $0xa8] sm:$0xff] %v681
    %746 = vst [vmem:[#allocation2 + $0xb0] sm:$0xff] %v682
    %747 = vst [vmem:[#allocation2 + $0xb8] sm:$0xff] %v683
    %748 = vst [vmem:[#allocation2 + $0xc0] sm:$0xff] %v684
    %749 = vst [vmem:[#allocation2 + $0xc8] sm:$0xff] %v685
    %750 = vst [vmem:[#allocation2 + $0xd0] sm:$0xff] %v686
    %751 = vst [vmem:[#allocation2 + $0xd8] sm:$0xff] %v687
    %752 = vst [vmem:[#allocation2 + $0xe0] sm:$0xff] %v688
    %753 = vst [vmem:[#allocation2 + $0xe8] sm:$0xff] %v689
    %754 = vst [vmem:[#allocation2 + $0xf0] sm:$0xff] %v690
    %755 = vst [vmem:[#allocation2 + $0xf8] sm:$0xff] %v691
    %756 = vst [vmem:[#allocation2 + $0x100] sm:$0xff] %v692
    %757 = vst [vmem:[#allocation2 + $0x108] sm:$0xff] %v693
    %758 = vst [vmem:[#allocation2 + $0x110] sm:$0xff] %v694
    %759 = vst [vmem:[#allocation2 + $0x118] sm:$0xff] %v695
    %760 = vst [vmem:[#allocation2 + $0x120] sm:$0xff] %v696
    %761 = vst [vmem:[#allocation2 + $0x128] sm:$0xff] %v697
    %762 = vst [vmem:[#allocation2 + $0x130] sm:$0xff] %v698
    %763 = vst [vmem:[#allocation2 + $0x138] sm:$0xff] %v699
    %764 = vst [vmem:[#allocation2 + $0x140] sm:$0xff] %v700
    %765 = vst [vmem:[#allocation2 + $0x148] sm:$0xff] %v701
    %766 = vst [vmem:[#allocation2 + $0x150] sm:$0xff] %v702
    %767 = vst [vmem:[#allocation2 + $0x158] sm:$0xff] %v703
    %768 = vst [vmem:[#allocation2 + $0x160] sm:$0xff] %v704
    %769 = vst [vmem:[#allocation2 + $0x168] sm:$0xff] %v705
    %770 = vst [vmem:[#allocation2 + $0x170] sm:$0xff] %v706
    %771 = vst [vmem:[#allocation2 + $0x178] sm:$0xff] %v707
    %772 = vst [vmem:[#allocation2 + $0x180] sm:$0xff] %v708
    %773 = vst [vmem:[#allocation2 + $0x188] sm:$0xff] %v709
    %774 = vst [vmem:[#allocation2 + $0x190] sm:$0xff] %v710
    %775 = vst [vmem:[#allocation2 + $0x198] sm:$0xff] %v711
    %776 = vst [vmem:[#allocation2 + $0x1a0] sm:$0xff] %v712
    %777 = vst [vmem:[#allocation2 + $0x1a8] sm:$0xff] %v713
    %778 = vst [vmem:[#allocation2 + $0x1b0] sm:$0xff] %v714
    %779 = vst [vmem:[#allocation2 + $0x1b8] sm:$0xff] %v715
    %780 = vst [vmem:[#allocation2 + $0x1c0] sm:$0xff] %v716
    %781 = vst [vmem:[#allocation2 + $0x1c8] sm:$0xff] %v717
    %782 = vst [vmem:[#allocation2 + $0x1d0] sm:$0xff] %v718
    %783 = vst [vmem:[#allocation2 + $0x1d8] sm:$0xff] %v719
    %784 = vst [vmem:[#allocation2 + $0x1e0] sm:$0xff] %v720
    %785 = vst [vmem:[#allocation2 + $0x1e8] sm:$0xff] %v721
    %786 = vst [vmem:[#allocation2 + $0x1f0] sm:$0xff] %v722
    %787 = vst [vmem:[#allocation2 + $0x1f8] sm:$0xff] %v723
    // Predicated region
    $region18: #{tpu_custom_call.1} parent=1 // pred_check
      %p788 = pneg %p16
    $region19: #{tpu_custom_call.1} parent=1 // pred_check_branch
      %790 = sbr.rel (%p788) target = $region21
    $region20: #{tpu_custom_call.1} parent=1 // pred_region
      %v791 = vld [vmem:[#allocation2] sm:$0xff]
      %v792 = vld [vmem:[#allocation2 + $0x8] sm:$0xff]
      %v793 = vld [vmem:[#allocation2 + $0x10] sm:$0xff]
      %v794 = vld [vmem:[#allocation2 + $0x18] sm:$0xff]
      %v795 = vld [vmem:[#allocation2 + $0x20] sm:$0xff]
      %v796 = vld [vmem:[#allocation2 + $0x28] sm:$0xff]
      %v797 = vld [vmem:[#allocation2 + $0x30] sm:$0xff]
      %v798 = vld [vmem:[#allocation2 + $0x38] sm:$0xff]
      %v799 = vld [vmem:[#allocation2 + $0x40] sm:$0xff]
      %v800 = vld [vmem:[#allocation2 + $0x48] sm:$0xff]
      %v801 = vld [vmem:[#allocation2 + $0x50] sm:$0xff]
      %v802 = vld [vmem:[#allocation2 + $0x58] sm:$0xff]
      %v803 = vld [vmem:[#allocation2 + $0x60] sm:$0xff]
      %v804 = vld [vmem:[#allocation2 + $0x68] sm:$0xff]
      %v805 = vld [vmem:[#allocation2 + $0x70] sm:$0xff]
      %v806 = vld [vmem:[#allocation2 + $0x78] sm:$0xff]
      %v807 = vld [vmem:[#allocation2 + $0x80] sm:$0xff]
      %v808 = vld [vmem:[#allocation2 + $0x88] sm:$0xff]
      %v809 = vld [vmem:[#allocation2 + $0x90] sm:$0xff]
      %v810 = vld [vmem:[#allocation2 + $0x98] sm:$0xff]
      %v811 = vld [vmem:[#allocation2 + $0xa0] sm:$0xff]
      %v812 = vld [vmem:[#allocation2 + $0xa8] sm:$0xff]
      %v813 = vld [vmem:[#allocation2 + $0xb0] sm:$0xff]
      %v814 = vld [vmem:[#allocation2 + $0xb8] sm:$0xff]
      %v815 = vld [vmem:[#allocation2 + $0xc0] sm:$0xff]
      %v816 = vld [vmem:[#allocation2 + $0xc8] sm:$0xff]
      %v817 = vld [vmem:[#allocation2 + $0xd0] sm:$0xff]
      %v818 = vld [vmem:[#allocation2 + $0xd8] sm:$0xff]
      %v819 = vld [vmem:[#allocation2 + $0xe0] sm:$0xff]
      %v820 = vld [vmem:[#allocation2 + $0xe8] sm:$0xff]
      %v821 = vld [vmem:[#allocation2 + $0xf0] sm:$0xff]
      %v822 = vld [vmem:[#allocation2 + $0xf8] sm:$0xff]
      %v823 = vld [vmem:[#allocation2 + $0x100] sm:$0xff]
      %v824 = vld [vmem:[#allocation2 + $0x108] sm:$0xff]
      %v825 = vld [vmem:[#allocation2 + $0x110] sm:$0xff]
      %v826 = vld [vmem:[#allocation2 + $0x118] sm:$0xff]
      %v827 = vld [vmem:[#allocation2 + $0x120] sm:$0xff]
      %v828 = vld [vmem:[#allocation2 + $0x128] sm:$0xff]
      %v829 = vld [vmem:[#allocation2 + $0x130] sm:$0xff]
      %v830 = vld [vmem:[#allocation2 + $0x138] sm:$0xff]
      %v831 = vld [vmem:[#allocation2 + $0x140] sm:$0xff]
      %v832 = vld [vmem:[#allocation2 + $0x148] sm:$0xff]
      %v833 = vld [vmem:[#allocation2 + $0x150] sm:$0xff]
      %v834 = vld [vmem:[#allocation2 + $0x158] sm:$0xff]
      %v835 = vld [vmem:[#allocation2 + $0x160] sm:$0xff]
      %v836 = vld [vmem:[#allocation2 + $0x168] sm:$0xff]
      %v837 = vld [vmem:[#allocation2 + $0x170] sm:$0xff]
      %v838 = vld [vmem:[#allocation2 + $0x178] sm:$0xff]
      %v839 = vld [vmem:[#allocation2 + $0x180] sm:$0xff]
      %v840 = vld [vmem:[#allocation2 + $0x188] sm:$0xff]
      %v841 = vld [vmem:[#allocation2 + $0x190] sm:$0xff]
      %v842 = vld [vmem:[#allocation2 + $0x198] sm:$0xff]
      %v843 = vld [vmem:[#allocation2 + $0x1a0] sm:$0xff]
      %v844 = vld [vmem:[#allocation2 + $0x1a8] sm:$0xff]
      %v845 = vld [vmem:[#allocation2 + $0x1b0] sm:$0xff]
      %v846 = vld [vmem:[#allocation2 + $0x1b8] sm:$0xff]
      %v847 = vld [vmem:[#allocation2 + $0x1c0] sm:$0xff]
      %v848 = vld [vmem:[#allocation2 + $0x1c8] sm:$0xff]
      %v849 = vld [vmem:[#allocation2 + $0x1d0] sm:$0xff]
      %v850 = vld [vmem:[#allocation2 + $0x1d8] sm:$0xff]
      %v851 = vld [vmem:[#allocation2 + $0x1e0] sm:$0xff]
      %v852 = vld [vmem:[#allocation2 + $0x1e8] sm:$0xff]
      %v853 = vld [vmem:[#allocation2 + $0x1f0] sm:$0xff]
      %v854 = vld [vmem:[#allocation2 + $0x1f8] sm:$0xff]
      %v855 = vld [vmem:[%s2] sm:$0x1]
      %v857 = vperm.slane %v855, 0
      %v859 = vadd.f32 %v791, %v857
      %v860 = vadd.f32 %v792, %v857
      %v861 = vadd.f32 %v793, %v857
      %v862 = vadd.f32 %v794, %v857
      %v863 = vadd.f32 %v795, %v857
      %v864 = vadd.f32 %v796, %v857
      %v865 = vadd.f32 %v797, %v857
      %v866 = vadd.f32 %v798, %v857
      %v867 = vadd.f32 %v799, %v857
      %v868 = vadd.f32 %v800, %v857
      %v869 = vadd.f32 %v801, %v857
      %v870 = vadd.f32 %v802, %v857
      %v871 = vadd.f32 %v803, %v857
      %v872 = vadd.f32 %v804, %v857
      %v873 = vadd.f32 %v805, %v857
      %v874 = vadd.f32 %v806, %v857
      %v875 = vadd.f32 %v807, %v857
      %v876 = vadd.f32 %v808, %v857
      %v877 = vadd.f32 %v809, %v857
      %v878 = vadd.f32 %v810, %v857
      %v879 = vadd.f32 %v811, %v857
      %v880 = vadd.f32 %v812, %v857
      %v881 = vadd.f32 %v813, %v857
      %v882 = vadd.f32 %v814, %v857
      %v883 = vadd.f32 %v815, %v857
      %v884 = vadd.f32 %v816, %v857
      %v885 = vadd.f32 %v817, %v857
      %v886 = vadd.f32 %v818, %v857
      %v887 = vadd.f32 %v819, %v857
      %v888 = vadd.f32 %v820, %v857
      %v889 = vadd.f32 %v821, %v857
      %v890 = vadd.f32 %v822, %v857
      %v891 = vadd.f32 %v823, %v857
      %v892 = vadd.f32 %v824, %v857
      %v893 = vadd.f32 %v825, %v857
      %v894 = vadd.f32 %v826, %v857
      %v895 = vadd.f32 %v827, %v857
      %v896 = vadd.f32 %v828, %v857
      %v897 = vadd.f32 %v829, %v857
      %v898 = vadd.f32 %v830, %v857
      %v899 = vadd.f32 %v831, %v857
      %v900 = vadd.f32 %v832, %v857
      %v901 = vadd.f32 %v833, %v857
      %v902 = vadd.f32 %v834, %v857
      %v903 = vadd.f32 %v835, %v857
      %v904 = vadd.f32 %v836, %v857
      %v905 = vadd.f32 %v837, %v857
      %v906 = vadd.f32 %v838, %v857
      %v907 = vadd.f32 %v839, %v857
      %v908 = vadd.f32 %v840, %v857
      %v909 = vadd.f32 %v841, %v857
      %v910 = vadd.f32 %v842, %v857
      %v911 = vadd.f32 %v843, %v857
      %v912 = vadd.f32 %v844, %v857
      %v913 = vadd.f32 %v845, %v857
      %v914 = vadd.f32 %v846, %v857
      %v915 = vadd.f32 %v847, %v857
      %v916 = vadd.f32 %v848, %v857
      %v917 = vadd.f32 %v849, %v857
      %v918 = vadd.f32 %v850, %v857
      %v919 = vadd.f32 %v851, %v857
      %v920 = vadd.f32 %v852, %v857
      %v921 = vadd.f32 %v853, %v857
      %v922 = vadd.f32 %v854, %v857
      %v923 = vmax.f32 %v859, 0.0
      %v924 = vmax.f32 %v860, 0.0
      %v925 = vmax.f32 %v861, 0.0
      %v926 = vmax.f32 %v862, 0.0
      %v927 = vmax.f32 %v863, 0.0
      %v928 = vmax.f32 %v864, 0.0
      %v929 = vmax.f32 %v865, 0.0
      %v930 = vmax.f32 %v866, 0.0
      %v931 = vmax.f32 %v867, 0.0
      %v932 = vmax.f32 %v868, 0.0
      %v933 = vmax.f32 %v869, 0.0
      %v934 = vmax.f32 %v870, 0.0
      %v935 = vmax.f32 %v871, 0.0
      %v936 = vmax.f32 %v872, 0.0
      %v937 = vmax.f32 %v873, 0.0
      %v938 = vmax.f32 %v874, 0.0
      %v939 = vmax.f32 %v875, 0.0
      %v940 = vmax.f32 %v876, 0.0
      %v941 = vmax.f32 %v877, 0.0
      %v942 = vmax.f32 %v878, 0.0
      %v943 = vmax.f32 %v879, 0.0
      %v944 = vmax.f32 %v880, 0.0
      %v945 = vmax.f32 %v881, 0.0
      %v946 = vmax.f32 %v882, 0.0
      %v947 = vmax.f32 %v883, 0.0
      %v948 = vmax.f32 %v884, 0.0
      %v949 = vmax.f32 %v885, 0.0
      %v950 = vmax.f32 %v886, 0.0
      %v951 = vmax.f32 %v887, 0.0
      %v952 = vmax.f32 %v888, 0.0
      %v953 = vmax.f32 %v889, 0.0
      %v954 = vmax.f32 %v890, 0.0
      %v955 = vmax.f32 %v891, 0.0
      %v956 = vmax.f32 %v892, 0.0
      %v957 = vmax.f32 %v893, 0.0
      %v958 = vmax.f32 %v894, 0.0
      %v959 = vmax.f32 %v895, 0.0
      %v960 = vmax.f32 %v896, 0.0
      %v961 = vmax.f32 %v897, 0.0
      %v962 = vmax.f32 %v898, 0.0
      %v963 = vmax.f32 %v899, 0.0
      %v964 = vmax.f32 %v900, 0.0
      %v965 = vmax.f32 %v901, 0.0
      %v966 = vmax.f32 %v902, 0.0
      %v967 = vmax.f32 %v903, 0.0
      %v968 = vmax.f32 %v904, 0.0
      %v969 = vmax.f32 %v905, 0.0
      %v970 = vmax.f32 %v906, 0.0
      %v971 = vmax.f32 %v907, 0.0
      %v972 = vmax.f32 %v908, 0.0
      %v973 = vmax.f32 %v909, 0.0
      %v974 = vmax.f32 %v910, 0.0
      %v975 = vmax.f32 %v911, 0.0
      %v976 = vmax.f32 %v912, 0.0
      %v977 = vmax.f32 %v913, 0.0
      %v978 = vmax.f32 %v914, 0.0
      %v979 = vmax.f32 %v915, 0.0
      %v980 = vmax.f32 %v916, 0.0
      %v981 = vmax.f32 %v917, 0.0
      %v982 = vmax.f32 %v918, 0.0
      %v983 = vmax.f32 %v919, 0.0
      %v984 = vmax.f32 %v920, 0.0
      %v985 = vmax.f32 %v921, 0.0
      %v986 = vmax.f32 %v922, 0.0
      %v987 = vpack.c.bf16 %v923, %v923
      %v988 = vpack.c.bf16 %v924, %v924
      %v989 = vpack.c.bf16 %v925, %v925
      %v990 = vpack.c.bf16 %v926, %v926
      %v991 = vpack.c.bf16 %v927, %v927
      %v992 = vpack.c.bf16 %v928, %v928
      %v993 = vpack.c.bf16 %v929, %v929
      %v994 = vpack.c.bf16 %v930, %v930
      %v995 = vpack.c.bf16 %v931, %v931
      %v996 = vpack.c.bf16 %v932, %v932
      %v997 = vpack.c.bf16 %v933, %v933
      %v998 = vpack.c.bf16 %v934, %v934
      %v999 = vpack.c.bf16 %v935, %v935
      %v1000 = vpack.c.bf16 %v936, %v936
      %v1001 = vpack.c.bf16 %v937, %v937
      %v1002 = vpack.c.bf16 %v938, %v938
      %v1003 = vpack.c.bf16 %v939, %v939
      %v1004 = vpack.c.bf16 %v940, %v940
      %v1005 = vpack.c.bf16 %v941, %v941
      %v1006 = vpack.c.bf16 %v942, %v942
      %v1007 = vpack.c.bf16 %v943, %v943
      %v1008 = vpack.c.bf16 %v944, %v944
      %v1009 = vpack.c.bf16 %v945, %v945
      %v1010 = vpack.c.bf16 %v946, %v946
      %v1011 = vpack.c.bf16 %v947, %v947
      %v1012 = vpack.c.bf16 %v948, %v948
      %v1013 = vpack.c.bf16 %v949, %v949
      %v1014 = vpack.c.bf16 %v950, %v950
      %v1015 = vpack.c.bf16 %v951, %v951
      %v1016 = vpack.c.bf16 %v952, %v952
      %v1017 = vpack.c.bf16 %v953, %v953
      %v1018 = vpack.c.bf16 %v954, %v954
      %v1019 = vpack.c.bf16 %v955, %v955
      %v1020 = vpack.c.bf16 %v956, %v956
      %v1021 = vpack.c.bf16 %v957, %v957
      %v1022 = vpack.c.bf16 %v958, %v958
      %v1023 = vpack.c.bf16 %v959, %v959
      %v1024 = vpack.c.bf16 %v960, %v960
      %v1025 = vpack.c.bf16 %v961, %v961
      %v1026 = vpack.c.bf16 %v962, %v962
      %v1027 = vpack.c.bf16 %v963, %v963
      %v1028 = vpack.c.bf16 %v964, %v964
      %v1029 = vpack.c.bf16 %v965, %v965
      %v1030 = vpack.c.bf16 %v966, %v966
      %v1031 = vpack.c.bf16 %v967, %v967
      %v1032 = vpack.c.bf16 %v968, %v968
      %v1033 = vpack.c.bf16 %v969, %v969
      %v1034 = vpack.c.bf16 %v970, %v970
      %v1035 = vpack.c.bf16 %v971, %v971
      %v1036 = vpack.c.bf16 %v972, %v972
      %v1037 = vpack.c.bf16 %v973, %v973
      %v1038 = vpack.c.bf16 %v974, %v974
      %v1039 = vpack.c.bf16 %v975, %v975
      %v1040 = vpack.c.bf16 %v976, %v976
      %v1041 = vpack.c.bf16 %v977, %v977
      %v1042 = vpack.c.bf16 %v978, %v978
      %v1043 = vpack.c.bf16 %v979, %v979
      %v1044 = vpack.c.bf16 %v980, %v980
      %v1045 = vpack.c.bf16 %v981, %v981
      %v1046 = vpack.c.bf16 %v982, %v982
      %v1047 = vpack.c.bf16 %v983, %v983
      %v1048 = vpack.c.bf16 %v984, %v984
      %v1049 = vpack.c.bf16 %v985, %v985
      %v1050 = vpack.c.bf16 %v986, %v986
      %1051 = vst [vmem:[#allocation3] sm:$0xf] %v987
      %1052 = vst [vmem:[#allocation3 + $0x4] sm:$0xf] %v988
      %1053 = vst [vmem:[#allocation3 + $0x8] sm:$0xf] %v989
      %1054 = vst [vmem:[#allocation3 + $0xc] sm:$0xf] %v990
      %1055 = vst [vmem:[#allocation3 + $0x10] sm:$0xf] %v991
      %1056 = vst [vmem:[#allocation3 + $0x14] sm:$0xf] %v992
      %1057 = vst [vmem:[#allocation3 + $0x18] sm:$0xf] %v993
      %1058 = vst [vmem:[#allocation3 + $0x1c] sm:$0xf] %v994
      %1059 = vst [vmem:[#allocation3 + $0x20] sm:$0xf] %v995
      %1060 = vst [vmem:[#allocation3 + $0x24] sm:$0xf] %v996
      %1061 = vst [vmem:[#allocation3 + $0x28] sm:$0xf] %v997
      %1062 = vst [vmem:[#allocation3 + $0x2c] sm:$0xf] %v998
      %1063 = vst [vmem:[#allocation3 + $0x30] sm:$0xf] %v999
      %1064 = vst [vmem:[#allocation3 + $0x34] sm:$0xf] %v1000
      %1065 = vst [vmem:[#allocation3 + $0x38] sm:$0xf] %v1001
      %1066 = vst [vmem:[#allocation3 + $0x3c] sm:$0xf] %v1002
      %1067 = vst [vmem:[#allocation3 + $0x40] sm:$0xf] %v1003
      %1068 = vst [vmem:[#allocation3 + $0x44] sm:$0xf] %v1004
      %1069 = vst [vmem:[#allocation3 + $0x48] sm:$0xf] %v1005
      %1070 = vst [vmem:[#allocation3 + $0x4c] sm:$0xf] %v1006
      %1071 = vst [vmem:[#allocation3 + $0x50] sm:$0xf] %v1007
      %1072 = vst [vmem:[#allocation3 + $0x54] sm:$0xf] %v1008
      %1073 = vst [vmem:[#allocation3 + $0x58] sm:$0xf] %v1009
      %1074 = vst [vmem:[#allocation3 + $0x5c] sm:$0xf] %v1010
      %1075 = vst [vmem:[#allocation3 + $0x60] sm:$0xf] %v1011
      %1076 = vst [vmem:[#allocation3 + $0x64] sm:$0xf] %v1012
      %1077 = vst [vmem:[#allocation3 + $0x68] sm:$0xf] %v1013
      %1078 = vst [vmem:[#allocation3 + $0x6c] sm:$0xf] %v1014
      %1079 = vst [vmem:[#allocation3 + $0x70] sm:$0xf] %v1015
      %1080 = vst [vmem:[#allocation3 + $0x74] sm:$0xf] %v1016
      %1081 = vst [vmem:[#allocation3 + $0x78] sm:$0xf] %v1017
      %1082 = vst [vmem:[#allocation3 + $0x7c] sm:$0xf] %v1018
      %1083 = vst [vmem:[#allocation3 + $0x80] sm:$0xf] %v1019
      %1084 = vst [vmem:[#allocation3 + $0x84] sm:$0xf] %v1020
      %1085 = vst [vmem:[#allocation3 + $0x88] sm:$0xf] %v1021
      %1086 = vst [vmem:[#allocation3 + $0x8c] sm:$0xf] %v1022
      %1087 = vst [vmem:[#allocation3 + $0x90] sm:$0xf] %v1023
      %1088 = vst [vmem:[#allocation3 + $0x94] sm:$0xf] %v1024
      %1089 = vst [vmem:[#allocation3 + $0x98] sm:$0xf] %v1025
      %1090 = vst [vmem:[#allocation3 + $0x9c] sm:$0xf] %v1026
      %1091 = vst [vmem:[#allocation3 + $0xa0] sm:$0xf] %v1027
      %1092 = vst [vmem:[#allocation3 + $0xa4] sm:$0xf] %v1028
      %1093 = vst [vmem:[#allocation3 + $0xa8] sm:$0xf] %v1029
      %1094 = vst [vmem:[#allocation3 + $0xac] sm:$0xf] %v1030
      %1095 = vst [vmem:[#allocation3 + $0xb0] sm:$0xf] %v1031
      %1096 = vst [vmem:[#allocation3 + $0xb4] sm:$0xf] %v1032
      %1097 = vst [vmem:[#allocation3 + $0xb8] sm:$0xf] %v1033
      %1098 = vst [vmem:[#allocation3 + $0xbc] sm:$0xf] %v1034
      %1099 = vst [vmem:[#allocation3 + $0xc0] sm:$0xf] %v1035
      %1100 = vst [vmem:[#allocation3 + $0xc4] sm:$0xf] %v1036
      %1101 = vst [vmem:[#allocation3 + $0xc8] sm:$0xf] %v1037
      %1102 = vst [vmem:[#allocation3 + $0xcc] sm:$0xf] %v1038
      %1103 = vst [vmem:[#allocation3 + $0xd0] sm:$0xf] %v1039
      %1104 = vst [vmem:[#allocation3 + $0xd4] sm:$0xf] %v1040
      %1105 = vst [vmem:[#allocation3 + $0xd8] sm:$0xf] %v1041
      %1106 = vst [vmem:[#allocation3 + $0xdc] sm:$0xf] %v1042
      %1107 = vst [vmem:[#allocation3 + $0xe0] sm:$0xf] %v1043
      %1108 = vst [vmem:[#allocation3 + $0xe4] sm:$0xf] %v1044
      %1109 = vst [vmem:[#allocation3 + $0xe8] sm:$0xf] %v1045
      %1110 = vst [vmem:[#allocation3 + $0xec] sm:$0xf] %v1046
      %1111 = vst [vmem:[#allocation3 + $0xf0] sm:$0xf] %v1047
      %1112 = vst [vmem:[#allocation3 + $0xf4] sm:$0xf] %v1048
      %1113 = vst [vmem:[#allocation3 + $0xf8] sm:$0xf] %v1049
      %1114 = vst [vmem:[#allocation3 + $0xfc] sm:$0xf] %v1050
    $region21: #{tpu_custom_call.1} parent=1 // pred_fallthru
      _
    // Predicated region
    $region22: #{tpu_custom_call.1} parent=1 // pred_check
      _
    $region23: #{tpu_custom_call.1} parent=1 // pred_check_branch
      %1116 = sbr.rel (0) target = $region25
    $region24: #{tpu_custom_call.1} parent=1 // pred_region
      %1118 = vsyncadd [#allocation4], 0
      %s1119 = sshll.u32 [#allocation3], 4
      %s1120 = int_to_ptr.vmem [resolvable:$true] %s1119
      %s1121 = sshll.u32 %s3, 4
      %s1122 = int_to_ptr.hbm [resolvable:$true] %s1121
      %1127 = dma.vmem_to_hbm [thread:$0]  %s1120, 4096, %s1122, [#allocation4], 64, 64, 4
    $region25: #{tpu_custom_call.1} parent=1 // pred_fallthru
      _
    // Predicated region
    $region26: #{tpu_custom_call.1} parent=1 // pred_check
      _
    $region27: #{tpu_custom_call.1} parent=1 // pred_check_branch
      %1129 = sbr.rel (0) target = $region29
    $region28: #{tpu_custom_call.1} parent=1 // pred_region
      %1131 = dma.done [#allocation4], 4096
    $region29: #{tpu_custom_call.1} parent=1 // pred_fallthru
      _
    %1132 = vsyncpa [#allocation4], 1

</llo_original>
